<compile_context>
chip_gen: v7x
topology: tpu7x:2x2x1
jax: 0.10.0
libtpu: 0.0.40
codegen_flags: <defaults>
</compile_context>

<pallas_src>
import jax
import jax.numpy as jnp
from jax import lax
from jax.experimental import pallas as pl
from jax.experimental.pallas import tpu as pltpu

LATENT_SIZE = 300
NUM_CLASSES = 4
NUM_PROTOTYPES = 8
PROTOTYPE_SIZE = 50
EPSILON = 1e-5      # prototype-activation epsilon (self.epsilon)
BN_EPS = 1e-5       # nn.BatchNorm1d default eps

_FUSED_N = PROTOTYPE_SIZE + NUM_PROTOTYPES   # 58: [emb | -2 e.p (+||p||^2 via bias)]
_AUX_LANES = 128                              # lane-aligned rows for the small vectors
_OUT_LANES = 64                               # output slab: 0:50 emb, 50:54 tanh(logits)


def ppnet_kernel(x_ref, w1_ref, w2c_ref, aux_ref, out_ref):
    x = x_ref[...]                                              # (bb, 300) bf16

    # Coalesced small vectors (single f32 VMEM tile, single DMA):
    #   row 0: BN-folded bias b1'
    #   row 1: [b2 | b2 @ (-2 P^T) + ||p||^2]  (fused bias for the 50x58 matmul)
    b1 = aux_ref[0:1, 0:PROTOTYPE_SIZE]                         # (1, 50)
    bc = aux_ref[1:2, 0:_FUSED_N]                               # (1, 58)

    # --- self.main: Linear(300->50) with eval-mode BatchNorm folded in, ReLU.
    # TODO(synk): BatchNorm is eval-mode only (running stats folded into w1'/b1');
    # the train-mode batch-statistics path is not reproduced.
    h = jnp.dot(x, w1_ref[...], preferred_element_type=jnp.float32) + b1
    h = jnp.maximum(h, 0.0)                                     # (bb, 50) f32

    # --- fused Linear(50->50) + prototype cross-term (one MXU push) ---------
    hb = jnp.dot(h.astype(jnp.bfloat16), w2c_ref[...],
                 preferred_element_type=jnp.float32) + bc       # (bb, 58)
    emb = hb[:, :PROTOTYPE_SIZE]                                # (bb, 50)  = second output
    cross_pn = hb[:, PROTOTYPE_SIZE:_FUSED_N]                   # (bb, 8) = -2 e.p + ||p||^2

    # --- prototype L2 layer via ||e-p||^2 = ||e||^2 - 2 e.p + ||p||^2 -------
    # TODO(synk): this reformulation is cancellation-sensitive when emb ~= a
    # prototype; the final output is still safe (tanh saturates as l2s -> 0),
    # but the activation magnitude near l2s ~ 0 can deviate from the
    # broadcast-based formula on f32-cancelled data.
    e2 = jnp.sum(emb * emb, axis=-1, keepdims=True)             # (bb, 1)
    l2s = jnp.maximum(e2 + cross_pn, 0.0)                       # guard fp cancellation
    p_acts = jnp.log(l2s + 1.0) - jnp.log(l2s + EPSILON)        # (bb, 8)

    # --- fixed +/-1 linear head (baked in-kernel, no DMA) + tanh ------------
    rows = lax.broadcasted_iota(jnp.int32, (NUM_PROTOTYPES, NUM_CLASSES), 0)
    cols = lax.broadcasted_iota(jnp.int32, (NUM_PROTOTYPES, NUM_CLASSES), 1)
    w_head = (jnp.where(rows == 2 * cols, 1.0, 0.0)
              - jnp.where(rows == 2 * cols + 1, 1.0, 0.0)).astype(jnp.float32)
    final = jnp.tanh(jnp.dot(p_acts, w_head,
                             preferred_element_type=jnp.float32))   # (bb, 4)

    # --- single lane-aligned output slab ------------------------------------
    pad = jnp.zeros((emb.shape[0], _OUT_LANES - PROTOTYPE_SIZE - NUM_CLASSES),
                    jnp.float32)
    out_ref[...] = jnp.concatenate([emb, final, pad], axis=-1)  # (bb, 64)


def _prepare(params):
    """Wrapper-side layout work: fold BN, fuse matmuls, cast streams to bf16."""
    scale = params["bn_gamma"].reshape(-1) * lax.rsqrt(params["bn_var"].reshape(-1) + BN_EPS)
    w1f = params["w1"].T * scale[None, :]                               # (300, 50)
    b1f = ((params["b1"].reshape(-1) - params["bn_mean"].reshape(-1)) * scale
           + params["bn_beta"].reshape(-1))                             # (50,)

    w2t = params["w2"].T                                                # (50, 50)
    b2 = params["b2"].reshape(-1)                                       # (50,)
    pneg2t = -2.0 * params["prototypes"].T                              # (50, 8)
    pnorm = jnp.sum(params["prototypes"] ** 2, axis=1)                  # (8,)

    # Fused second matmul: hb = h @ [w2t | w2t@pneg2t] + [b2 | b2@pneg2t + ||p||^2]
    w2c = jnp.concatenate([w2t, w2t @ pneg2t], axis=1)                  # (50, 58)
    bc = jnp.concatenate([b2, b2 @ pneg2t + pnorm])                     # (58,)

    aux = jnp.zeros((2, _AUX_LANES), jnp.float32)
    aux = aux.at[0, :PROTOTYPE_SIZE].set(b1f.astype(jnp.float32))
    aux = aux.at[1, :_FUSED_N].set(bc.astype(jnp.float32))
    return w1f.astype(jnp.bfloat16), w2c.astype(jnp.bfloat16), aux


def _round_up(a, m):
    return ((a + m - 1) // m) * m


def ppnet_forward(x, params, *, block_b=4096):
    """Forward pass. Returns (final_outputs (B,4), latent embedding (B,50))."""
    B = x.shape[0]
    w1f, w2c, aux = _prepare(params)
    x = x.astype(jnp.bfloat16)          # halve the dominant HBM-read stream

    # Batch tile:
    #  * tiny batch      -> single full-array block (no pipelining overhead),
    #  * 512 < B <= 4096 -> split into >=2 grid steps so both v7x TensorCores
    #                       (and their DMA paths) run; no-op on v5e/v6e,
    #  * large batch     -> 4096-row blocks: bf16 x tile ~2.4 MB x2 buffers +
    #                       ~1 MB x2 output, well under the default scoped
    #                       VMEM limit on every generation (incl. v7x's 64 MiB).
    if B > block_b:
        bb = block_b
    elif B > 512:
        bb = _round_up(pl.cdiv(B, 2), 8)
    else:
        bb = B
    grid = (pl.cdiv(B, bb),)

    slab = pl.pallas_call(
        ppnet_kernel,
        out_shape=jax.ShapeDtypeStruct((B, _OUT_LANES), jnp.float32),
        grid_spec=pltpu.PrefetchScalarGridSpec(
            num_scalar_prefetch=0,
            grid=grid,
            in_specs=[
                pl.BlockSpec((bb, LATENT_SIZE), lambda i: (i, 0)),              # x (bf16)
                pl.BlockSpec((LATENT_SIZE, PROTOTYPE_SIZE), lambda i: (0, 0)),  # w1 fused BN
                pl.BlockSpec((PROTOTYPE_SIZE, _FUSED_N), lambda i: (0, 0)),     # [w2^T | w2^T(-2P^T)]
                pl.BlockSpec((2, _AUX_LANES), lambda i: (0, 0)),                # aux tile (f32)
            ],
            out_specs=pl.BlockSpec((bb, _OUT_LANES), lambda i: (i, 0)),
        ),
        compiler_params=pltpu.CompilerParams(
            dimension_semantics=("parallel",)),
    )(x, w1f, w2c, aux)

    final_outputs = slab[:, PROTOTYPE_SIZE:PROTOTYPE_SIZE + NUM_CLASSES]
    emb = slab[:, :PROTOTYPE_SIZE]
    return final_outputs, emb


def make_params(key):
    k1, k2, k3, k4, k5 = jax.random.split(key, 5)
    # nn.Linear(300, 50)  (PyTorch (out, in) layout)
    w1 = (jax.random.normal(k1, (PROTOTYPE_SIZE, LATENT_SIZE), jnp.float32)
          * (1.0 / jnp.sqrt(LATENT_SIZE)))
    b1 = jax.random.normal(k2, (1, PROTOTYPE_SIZE), jnp.float32) * 0.01
    # nn.BatchNorm1d(50): PyTorch default init (gamma=1, beta=0, mean=0, var=1)
    bn_gamma = jnp.ones((1, PROTOTYPE_SIZE), jnp.float32)
    bn_beta = jnp.zeros((1, PROTOTYPE_SIZE), jnp.float32)
    bn_mean = jnp.zeros((1, PROTOTYPE_SIZE), jnp.float32)
    bn_var = jnp.ones((1, PROTOTYPE_SIZE), jnp.float32)
    # nn.Linear(50, 50)
    w2 = (jax.random.normal(k3, (PROTOTYPE_SIZE, PROTOTYPE_SIZE), jnp.float32)
          * (1.0 / jnp.sqrt(PROTOTYPE_SIZE)))
    b2 = jax.random.normal(k4, (1, PROTOTYPE_SIZE), jnp.float32) * 0.01
    # prototypes ~ randn((8, 50))
    prototypes = jax.random.normal(k5, (NUM_PROTOTYPES, PROTOTYPE_SIZE), jnp.float32)
    return dict(w1=w1, b1=b1, bn_gamma=bn_gamma, bn_beta=bn_beta,
                bn_mean=bn_mean, bn_var=bn_var, w2=w2, b2=b2,
                prototypes=prototypes)


def ppnet_reference(x, p):
    """Pure-JAX f32 mirror of the PyTorch module (unfused, broadcast-based L2)."""
    h = x @ p["w1"].T + p["b1"]
    h = (h - p["bn_mean"]) / jnp.sqrt(p["bn_var"] + BN_EPS) * p["bn_gamma"] + p["bn_beta"]
    h = jnp.maximum(h, 0.0)
    emb = h @ p["w2"].T + p["b2"]
    l2s = jnp.sum((emb[:, None, :] - p["prototypes"][None, :, :]) ** 2, axis=-1)
    acts = jnp.log((l2s + 1.0) / (l2s + EPSILON))
    custom = jnp.array([[1.0, 0.0, 0.0, 0.0],
                        [-1.0, 0.0, 0.0, 0.0],
                        [0.0, 1.0, 0.0, 0.0],
                        [0.0, -1.0, 0.0, 0.0],
                        [0.0, 0.0, 1.0, 0.0],
                        [0.0, 0.0, -1.0, 0.0],
                        [0.0, 0.0, 0.0, 1.0],
                        [0.0, 0.0, 0.0, -1.0]], jnp.float32)
    return jnp.tanh(acts @ custom), emb


if __name__ == "__main__":
    key = jax.random.PRNGKey(0)
    kx, kp = jax.random.split(key)
    B = 8
    x = jax.random.normal(kx, (B, LATENT_SIZE), jnp.float32)
    params = make_params(kp)

    final_outputs, latent = ppnet_forward(x, params)
    jax.block_until_ready((final_outputs, latent))

    ref_out, ref_latent = ppnet_reference(x, params)
    assert final_outputs.shape == (B, NUM_CLASSES)
    assert latent.shape == (B, PROTOTYPE_SIZE)
    # Tolerances relaxed vs the pure-f32 reference because x / weights are
    # streamed in bf16 (the f32-accumulated results differ at ~bf16 precision).
    assert jnp.allclose(final_outputs, ref_out, atol=5e-3, rtol=1e-3), (
        jnp.max(jnp.abs(final_outputs - ref_out)))
    assert jnp.allclose(latent, ref_latent, atol=5e-2, rtol=5e-2), (
        jnp.max(jnp.abs(latent - ref_latent)))
    print("KERNEL_OK")
</pallas_src>

<mosaic_0001>
module attributes {stable_mosaic.version = 11 : i64} {
  func.func @ppnet_kernel(%arg0: i32, %arg1: memref<8x300xbf16, #tpu.memory_space<vmem>>, %arg2: memref<300x50xbf16, #tpu.memory_space<vmem>>, %arg3: memref<50x58xbf16, #tpu.memory_space<vmem>>, %arg4: memref<2x128xf32, #tpu.memory_space<vmem>>, %arg5: memref<8x64xf32, #tpu.memory_space<vmem>>) attributes {dimension_semantics = [#tpu.dimension_semantics<parallel>], iteration_bounds = array<i64: 1>, scalar_prefetch = 0 : i64, scratch_operands = 0 : i64, tpu.core_type = #tpu.core_type<tc>, window_params = [{transform_indices = @transform_0, window_bounds = array<i64: 8, 300>}, {pipeline_mode = #tpu.pipeline_mode<synchronous>, transform_indices = @transform_1, window_bounds = array<i64: 300, 50>}, {pipeline_mode = #tpu.pipeline_mode<synchronous>, transform_indices = @transform_2, window_bounds = array<i64: 50, 58>}, {pipeline_mode = #tpu.pipeline_mode<synchronous>, transform_indices = @transform_3, window_bounds = array<i64: 2, 128>}, {transform_indices = @transform_4, window_bounds = array<i64: 8, 64>}]} {
    %c0 = arith.constant 0 : index
    %c0_0 = arith.constant 0 : index
    %0 = vector.load %arg1[%c0, %c0_0] : memref<8x300xbf16, #tpu.memory_space<vmem>>, vector<8x300xbf16>
    %c0_1 = arith.constant 0 : index
    %c0_2 = arith.constant 0 : index
    %1 = vector.load %arg4[%c0_1, %c0_2] : memref<2x128xf32, #tpu.memory_space<vmem>>, vector<1x50xf32>
    %c1 = arith.constant 1 : index
    %c0_3 = arith.constant 0 : index
    %2 = vector.load %arg4[%c1, %c0_3] : memref<2x128xf32, #tpu.memory_space<vmem>>, vector<1x58xf32>
    %c0_4 = arith.constant 0 : index
    %c0_5 = arith.constant 0 : index
    %3 = vector.load %arg2[%c0_4, %c0_5] : memref<300x50xbf16, #tpu.memory_space<vmem>>, vector<300x50xbf16>
    %cst = arith.constant dense<0.000000e+00> : vector<8x50xf32>
    %4 = tpu.matmul %0, %3, %cst {dimension_numbers = #tpu.dot_dimension_numbers<[1], [0], [0], [1], [0, 0, 1, 1], [], []>} : vector<8x300xbf16>, vector<300x50xbf16>, vector<8x50xf32> -> vector<8x50xf32>
    %5 = vector.broadcast %1 : vector<1x50xf32> to vector<8x50xf32>
    %6 = arith.addf %4, %5 : vector<8x50xf32>
    %cst_6 = arith.constant 0.000000e+00 : f32
    %7 = vector.broadcast %cst_6 : f32 to vector<8x50xf32>
    %8 = arith.maximumf %6, %7 : vector<8x50xf32>
    %9 = arith.truncf %8 : vector<8x50xf32> to vector<8x50xbf16>
    %c0_7 = arith.constant 0 : index
    %c0_8 = arith.constant 0 : index
    %10 = vector.load %arg3[%c0_7, %c0_8] : memref<50x58xbf16, #tpu.memory_space<vmem>>, vector<50x58xbf16>
    %cst_9 = arith.constant dense<0.000000e+00> : vector<8x58xf32>
    %11 = tpu.matmul %9, %10, %cst_9 {dimension_numbers = #tpu.dot_dimension_numbers<[1], [0], [0], [1], [0, 0, 1, 1], [], []>} : vector<8x50xbf16>, vector<50x58xbf16>, vector<8x58xf32> -> vector<8x58xf32>
    %12 = vector.broadcast %2 : vector<1x58xf32> to vector<8x58xf32>
    %13 = arith.addf %11, %12 : vector<8x58xf32>
    %14 = vector.extract_strided_slice %13 {offsets = [0, 0], sizes = [8, 50], strides = [1, 1]} : vector<8x58xf32> to vector<8x50xf32>
    %15 = vector.extract_strided_slice %13 {offsets = [0, 50], sizes = [8, 8], strides = [1, 1]} : vector<8x58xf32> to vector<8x8xf32>
    %16 = arith.mulf %14, %14 : vector<8x50xf32>
    %cst_10 = arith.constant dense<0.000000e+00> : vector<8xf32>
    %17 = vector.multi_reduction <add>, %16, %cst_10 [1] : vector<8x50xf32> to vector<8xf32>
    %18 = vector.shape_cast %17 : vector<8xf32> to vector<8x1xf32>
    %19 = vector.broadcast %18 : vector<8x1xf32> to vector<8x8xf32>
    %20 = arith.addf %19, %15 : vector<8x8xf32>
    %cst_11 = arith.constant 0.000000e+00 : f32
    %21 = vector.broadcast %cst_11 : f32 to vector<8x8xf32>
    %22 = arith.maximumf %20, %21 : vector<8x8xf32>
    %cst_12 = arith.constant 1.000000e+00 : f32
    %23 = vector.broadcast %cst_12 : f32 to vector<8x8xf32>
    %24 = arith.addf %22, %23 : vector<8x8xf32>
    %25 = math.log %24 : vector<8x8xf32>
    %cst_13 = arith.constant 9.99999974E-6 : f32
    %26 = vector.broadcast %cst_13 : f32 to vector<8x8xf32>
    %27 = arith.addf %22, %26 : vector<8x8xf32>
    %28 = math.log %27 : vector<8x8xf32>
    %29 = arith.subf %25, %28 : vector<8x8xf32>
    %30 = tpu.iota {dimensions = array<i32: 0>} : vector<8x4xi32>
    %31 = tpu.iota {dimensions = array<i32: 1>} : vector<8x4xi32>
    %c2_i32 = arith.constant 2 : i32
    %32 = vector.broadcast %c2_i32 : i32 to vector<8x4xi32>
    %33 = arith.muli %32, %31 : vector<8x4xi32>
    %34 = arith.cmpi eq, %30, %33 : vector<8x4xi32>
    %cst_14 = arith.constant 1.000000e+00 : f32
    %cst_15 = arith.constant 0.000000e+00 : f32
    %35 = vector.broadcast %cst_14 : f32 to vector<8x4xf32>
    %36 = vector.broadcast %cst_15 : f32 to vector<8x4xf32>
    %37 = arith.select %34, %35, %36 : vector<8x4xi1>, vector<8x4xf32>
    %c2_i32_16 = arith.constant 2 : i32
    %38 = vector.broadcast %c2_i32_16 : i32 to vector<8x4xi32>
    %39 = arith.muli %38, %31 : vector<8x4xi32>
    %c1_i32 = arith.constant 1 : i32
    %40 = vector.broadcast %c1_i32 : i32 to vector<8x4xi32>
    %41 = arith.addi %39, %40 : vector<8x4xi32>
    %42 = arith.cmpi eq, %30, %41 : vector<8x4xi32>
    %cst_17 = arith.constant 1.000000e+00 : f32
    %cst_18 = arith.constant 0.000000e+00 : f32
    %43 = vector.broadcast %cst_17 : f32 to vector<8x4xf32>
    %44 = vector.broadcast %cst_18 : f32 to vector<8x4xf32>
    %45 = arith.select %42, %43, %44 : vector<8x4xi1>, vector<8x4xf32>
    %46 = arith.subf %37, %45 : vector<8x4xf32>
    %cst_19 = arith.constant dense<0.000000e+00> : vector<8x4xf32>
    %47 = tpu.matmul %29, %46, %cst_19 {dimension_numbers = #tpu.dot_dimension_numbers<[1], [0], [0], [1], [0, 0, 1, 1], [], []>} : vector<8x8xf32>, vector<8x4xf32>, vector<8x4xf32> -> vector<8x4xf32>
    %48 = math.tanh %47 : vector<8x4xf32>
    %cst_20 = arith.constant 0.000000e+00 : f32
    %49 = vector.broadcast %cst_20 : f32 to vector<8x10xf32>
    %50 = tpu.concatenate %14, %48, %49 in 1 : vector<8x50xf32>, vector<8x4xf32>, vector<8x10xf32> -> vector<8x64xf32>
    %c0_21 = arith.constant 0 : index
    %c0_22 = arith.constant 0 : index
    %51 = vector.load %arg5[%c0_21, %c0_22] : memref<8x64xf32, #tpu.memory_space<vmem>>, vector<8x64xf32>
    tpu.vector_store %arg5[%c0_21, %c0_22], %50 {strides = array<i32>} : memref<8x64xf32, #tpu.memory_space<vmem>>, vector<8x64xf32>,
    return
  }
  func.func @transform_0(%arg0: i32) -> (i32, i32) {
    %c0_i32 = arith.constant 0 : i32
    %c0_i32_0 = arith.constant 0 : i32
    return %arg0, %c0_i32 : i32, i32
  }
  func.func @transform_1(%arg0: i32) -> (i32, i32) {
    %c0_i32 = arith.constant 0 : i32
    %c0_i32_0 = arith.constant 0 : i32
    %c0_i32_1 = arith.constant 0 : i32
    return %c0_i32, %c0_i32_0 : i32, i32
  }
  func.func @transform_2(%arg0: i32) -> (i32, i32) {
    %c0_i32 = arith.constant 0 : i32
    %c0_i32_0 = arith.constant 0 : i32
    %c0_i32_1 = arith.constant 0 : i32
    return %c0_i32, %c0_i32_0 : i32, i32
  }
  func.func @transform_3(%arg0: i32) -> (i32, i32) {
    %c0_i32 = arith.constant 0 : i32
    %c0_i32_0 = arith.constant 0 : i32
    %c0_i32_1 = arith.constant 0 : i32
    return %c0_i32, %c0_i32_0 : i32, i32
  }
  func.func @transform_4(%arg0: i32) -> (i32, i32) {
    %c0_i32 = arith.constant 0 : i32
    %c0_i32_0 = arith.constant 0 : i32
    return %arg0, %c0_i32 : i32, i32
  }
}

</mosaic_0001>

<llo_original>
// kernel: tpu_custom_call.1
$region0: #{tpu_custom_call.1}
  #allocation0 [shape = 'u32[]', space=smem, size = 0x4, offset = 0x4, fixed_abs, tag = 'smem constant byte address 0x4 - core index']
  #allocation1 [shape = 'u32[144,128]{1,0:T(1,128)}', space=vmem, size = 0x12000, scoped, tag = 'internal scratch']
  %s0 = inlined_call_operand.vmem [shape: bf16[8,300], index: 0, kind: input, shape index: {}]
  %s1 = inlined_call_operand.vmem [shape: bf16[300,50], index: 1, kind: input, shape index: {}]
  %s2 = inlined_call_operand.vmem [shape: bf16[50,58], index: 2, kind: input, shape index: {}]
  %s3 = inlined_call_operand.vmem [shape: f32[2,128], index: 3, kind: input, shape index: {}]
  %s4 = inlined_call_operand.hbm [shape: f32[8,64], index: 4, kind: output, shape index: {}]
  %s5 = sld [smem:[#allocation0]]
  $region26: #{tpu_custom_call.1} parent=0
    _
  %s7 = ssub.s32 1, %s5
  %s8 = scalar_select 0, %s7, %s5
  $region1: #{tpu_custom_call.1} parent=0
    #allocation2 [shape = 'u8[4096]{0}', space=vmem, size = 0x1000, scoped, tag = 'output window, operand 0, single buffered']
    #allocation3 [shape = 's32[1]{0}', space=sflag, size = 0x4, scoped, tag = 'scoped memory for tpu_custom_call.1']
    %9 = vsyncpa [#allocation3], 0
    // Predicated region
    $region2: #{tpu_custom_call.1} parent=1 // pred_check
      _
    $region3: #{tpu_custom_call.1} parent=1 // pred_check_branch
      %11 = sbr.rel (0) target = $region5
    $region4: #{tpu_custom_call.1} parent=1 // pred_region
      _
    $region5: #{tpu_custom_call.1} parent=1 // pred_fallthru
      _
    // Predicated region
    $region6: #{tpu_custom_call.1} parent=1 // pred_check
      _
    $region7: #{tpu_custom_call.1} parent=1 // pred_check_branch
      %13 = sbr.rel (0) target = $region9
    $region8: #{tpu_custom_call.1} parent=1 // pred_region
      _
    $region9: #{tpu_custom_call.1} parent=1 // pred_fallthru
      _
    // Predicated region
    $region10: #{tpu_custom_call.1} parent=1 // pred_check
      _
    $region11: #{tpu_custom_call.1} parent=1 // pred_check_branch
      %15 = sbr.rel (0) target = $region13
    $region12: #{tpu_custom_call.1} parent=1 // pred_region
      _
    $region13: #{tpu_custom_call.1} parent=1 // pred_fallthru
      _
    // Predicated region
    $region14: #{tpu_custom_call.1} parent=1 // pred_check
      _
    $region15: #{tpu_custom_call.1} parent=1 // pred_check_branch
      %17 = sbr.rel (0) target = $region17
    $region16: #{tpu_custom_call.1} parent=1 // pred_region
      _
    $region17: #{tpu_custom_call.1} parent=1 // pred_fallthru
      _
    %v19 = vld [vmem:[%s0] sm:$0xff]
    %v20 = vld [vmem:[%s0 + $0x8] sm:$0xf]
    %v21 = vld [vmem:[%s3] sm:$0x1]
    %v22 = vld [vmem:[%s3 + $0x1] sm:$0x1]
    %v23 = vld [vmem:[%s1] sm:$0xf]
    %v24 = vld [vmem:[%s1 + $0x4] sm:$0xf]
    %v25 = vld [vmem:[%s1 + $0x8] sm:$0xf]
    %v26 = vld [vmem:[%s1 + $0xc] sm:$0xf]
    %v27 = vld [vmem:[%s1 + $0x10] sm:$0xf]
    %v28 = vld [vmem:[%s1 + $0x14] sm:$0xf]
    %v29 = vld [vmem:[%s1 + $0x18] sm:$0xf]
    %v30 = vld [vmem:[%s1 + $0x1c] sm:$0xf]
    %v31 = vld [vmem:[%s1 + $0x20] sm:$0xf]
    %v32 = vld [vmem:[%s1 + $0x24] sm:$0xf]
    %v33 = vld [vmem:[%s1 + $0x28] sm:$0xf]
    %v34 = vld [vmem:[%s1 + $0x2c] sm:$0xf]
    %v35 = vld [vmem:[%s1 + $0x30] sm:$0xf]
    %v36 = vld [vmem:[%s1 + $0x34] sm:$0xf]
    %v37 = vld [vmem:[%s1 + $0x38] sm:$0xf]
    %v38 = vld [vmem:[%s1 + $0x3c] sm:$0xf]
    %v39 = vld [vmem:[%s1 + $0x40] sm:$0xf]
    %v40 = vld [vmem:[%s1 + $0x44] sm:$0xf]
    %v41 = vld [vmem:[%s1 + $0x48] sm:$0xf]
    %v42 = vld [vmem:[%s1 + $0x4c] sm:$0xf]
    %v43 = vld [vmem:[%s1 + $0x50] sm:$0xf]
    %v44 = vld [vmem:[%s1 + $0x54] sm:$0xf]
    %v45 = vld [vmem:[%s1 + $0x58] sm:$0xf]
    %v46 = vld [vmem:[%s1 + $0x5c] sm:$0xf]
    %v47 = vld [vmem:[%s1 + $0x60] sm:$0xf]
    %v48 = vld [vmem:[%s1 + $0x64] sm:$0xf]
    %v49 = vld [vmem:[%s1 + $0x68] sm:$0xf]
    %v50 = vld [vmem:[%s1 + $0x6c] sm:$0xf]
    %v51 = vld [vmem:[%s1 + $0x70] sm:$0xf]
    %v52 = vld [vmem:[%s1 + $0x74] sm:$0xf]
    %v53 = vld [vmem:[%s1 + $0x78] sm:$0xf]
    %v54 = vld [vmem:[%s1 + $0x7c] sm:$0xf]
    %v55 = vld [vmem:[%s1 + $0x80] sm:$0xf]
    %v56 = vld [vmem:[%s1 + $0x84] sm:$0xf]
    %v57 = vld [vmem:[%s1 + $0x88] sm:$0xf]
    %v58 = vld [vmem:[%s1 + $0x8c] sm:$0xf]
    %v59 = vld [vmem:[%s1 + $0x90] sm:$0xf]
    %v60 = vld [vmem:[%s1 + $0x94] sm:$0x3]
    %v61 = vlaneseq
    %v62 = vshrl.u32 %v61, 7
    %v63 = vsub.s32 0, %v62
    %v64 = vrot.slane %v21, %v63
    %v67 = vunpack.c.l.b16 %v19
    %v68 = vunpack.c.h.b16 %v19
    %v69 = vunpack.c.l.b16 %v20
    %v70 = vpack.c.b16 %v67, %v67
    %v71 = vpack.c.b16 %v68, %v68
    %v72 = vpack.c.b16 %v69, %v69
    %v113 = vunpack.c.l.b16 %v23
    %v114 = vunpack.c.l.b16 %v24
    %v115 = vunpack.c.l.b16 %v25
    %v116 = vunpack.c.l.b16 %v26
    %v117 = vunpack.c.l.b16 %v27
    %v118 = vunpack.c.l.b16 %v28
    %v119 = vunpack.c.l.b16 %v29
    %v120 = vunpack.c.l.b16 %v30
    %v121 = vunpack.c.l.b16 %v31
    %v122 = vunpack.c.l.b16 %v32
    %v123 = vunpack.c.l.b16 %v33
    %v124 = vunpack.c.l.b16 %v34
    %v125 = vunpack.c.l.b16 %v35
    %v126 = vunpack.c.l.b16 %v36
    %v127 = vunpack.c.l.b16 %v37
    %v128 = vunpack.c.l.b16 %v38
    %v129 = vunpack.c.l.b16 %v39
    %v130 = vunpack.c.l.b16 %v40
    %v131 = vunpack.c.l.b16 %v41
    %v132 = vunpack.c.l.b16 %v42
    %v133 = vunpack.c.l.b16 %v43
    %v134 = vunpack.c.l.b16 %v44
    %v135 = vunpack.c.l.b16 %v45
    %v136 = vunpack.c.l.b16 %v46
    %v137 = vunpack.c.l.b16 %v47
    %v138 = vunpack.c.l.b16 %v48
    %v139 = vunpack.c.l.b16 %v49
    %v140 = vunpack.c.l.b16 %v50
    %v141 = vunpack.c.l.b16 %v51
    %v142 = vunpack.c.l.b16 %v52
    %v143 = vunpack.c.l.b16 %v53
    %v144 = vunpack.c.l.b16 %v54
    %v145 = vunpack.c.l.b16 %v55
    %v146 = vunpack.c.l.b16 %v56
    %v147 = vunpack.c.l.b16 %v57
    %v148 = vunpack.c.l.b16 %v58
    %v149 = vunpack.c.l.b16 %v59
    %v150 = vunpack.c.l.b16 %v60
    %v151 = vpack.c.b16 %v114, %v113
    %v152 = vpack.c.b16 %v116, %v115
    %v153 = vpack.c.b16 %v118, %v117
    %v154 = vpack.c.b16 %v120, %v119
    %v155 = vpack.c.b16 %v122, %v121
    %v156 = vpack.c.b16 %v124, %v123
    %v157 = vpack.c.b16 %v126, %v125
    %v158 = vpack.c.b16 %v128, %v127
    %v159 = vpack.c.b16 %v130, %v129
    %v160 = vpack.c.b16 %v132, %v131
    %v161 = vpack.c.b16 %v134, %v133
    %v162 = vpack.c.b16 %v136, %v135
    %v163 = vpack.c.b16 %v138, %v137
    %v164 = vpack.c.b16 %v140, %v139
    %v165 = vpack.c.b16 %v142, %v141
    %v166 = vpack.c.b16 %v144, %v143
    %v167 = vpack.c.b16 %v146, %v145
    %v168 = vpack.c.b16 %v148, %v147
    %v169 = vpack.c.b16 %v150, %v149
    %vm188 = vcmask 359424
    %v190 = vsel %vm188, %v72, 0
    %vm192 = vcmask 1045504
    %v194 = vsel %vm192, %v169, 0
    %196 = vmatprep.subr.bf16.mxu0 0
    %197 = vmatpush1.bf16.msra.mxu0 %v151
    %198 = vmatprep.subr.bf16.mxu0 0
    %199 = vmatpush1.bf16.msra.mxu0 %v152
    %200 = vmatprep.subr.bf16.mxu0 0
    %201 = vmatpush1.bf16.msra.mxu0 %v153
    %202 = vmatprep.subr.bf16.mxu0 0
    %203 = vmatpush1.bf16.msra.mxu0 %v154
    %204 = vmatprep.subr.bf16.mxu0 0
    %205 = vmatpush1.bf16.msra.mxu0 %v155
    %206 = vmatprep.subr.bf16.mxu0 0
    %207 = vmatpush1.bf16.msra.mxu0 %v156
    %208 = vmatprep.subr.bf16.mxu0 0
    %209 = vmatpush1.bf16.msra.mxu0 %v157
    %210 = vmatprep.subr.bf16.mxu0 0
    %211 = vmatpush1.bf16.msra.mxu0 %v158
    %212 = vmatprep.subr.bf16.mxu0 0
    %213 = vmatpush1.bf16.msra.mxu0 %v159
    %214 = vmatprep.subr.bf16.mxu0 0
    %215 = vmatpush1.bf16.msra.mxu0 %v160
    %216 = vmatprep.subr.bf16.mxu0 0
    %217 = vmatpush1.bf16.msra.mxu0 %v161
    %218 = vmatprep.subr.bf16.mxu0 0
    %219 = vmatpush1.bf16.msra.mxu0 %v162
    %220 = vmatprep.subr.bf16.mxu0 0
    %221 = vmatpush1.bf16.msra.mxu0 %v163
    %222 = vmatprep.subr.bf16.mxu0 0
    %223 = vmatpush1.bf16.msra.mxu0 %v164
    %224 = vmatprep.subr.bf16.mxu0 0
    %225 = vmatpush1.bf16.msra.mxu0 %v165
    %226 = vmatprep.subr.bf16.mxu0 0
    %227 = vmatpush1.bf16.msra.mxu0 %v166
    %228 = vmatprep.mubr.bf16.mxu0 %v71
    %229 = vmatmul.mubr.bf16.gmra.mrb[0].mxu0 %v70
    %v230 = vpop.f32.mrb[0].mxu0
    %v231 = vadd.f32 %v64, %v230
    %v232 = vpop.f32.mrb[0].mxu0
    %v233 = vpop.f32.mrb[0].mxu0
    %v234 = vpop.f32.mrb[0].mxu0
    %235 = vdwg.mxu0
    %236 = vmatprep.subr.bf16.mxu0 0
    %237 = vmatpush1.bf16.msra.mxu0 %v167
    %238 = vmatprep.subr.bf16.mxu0 0
    %239 = vmatpush1.bf16.msra.mxu0 %v168
    %240 = vmatprep.subr.bf16.mxu0 0
    %241 = vmatpush1.bf16.msra.mxu0 %v194
    %242 = vmatprep.subr.bf16.mxu0 0
    %243 = vmatpush1.bf16.msra.mxu0 0
    %244 = vmatprep.subr.bf16.mxu0 0
    %245 = vmatpush1.bf16.msra.mxu0 0
    %246 = vmatprep.subr.bf16.mxu0 0
    %247 = vmatpush1.bf16.msra.mxu0 0
    %248 = vmatprep.subr.bf16.mxu0 0
    %249 = vmatpush1.bf16.msra.mxu0 0
    %250 = vmatprep.subr.bf16.mxu0 0
    %251 = vmatpush1.bf16.msra.mxu0 0
    %252 = vmatprep.subr.bf16.mxu0 0
    %253 = vmatpush1.bf16.msra.mxu0 0
    %254 = vmatprep.subr.bf16.mxu0 0
    %255 = vmatpush1.bf16.msra.mxu0 0
    %256 = vmatprep.subr.bf16.mxu0 0
    %257 = vmatpush1.bf16.msra.mxu0 0
    %258 = vmatprep.subr.bf16.mxu0 0
    %259 = vmatpush1.bf16.msra.mxu0 0
    %260 = vmatprep.subr.bf16.mxu0 0
    %261 = vmatpush1.bf16.msra.mxu0 0
    %262 = vmatprep.subr.bf16.mxu0 0
    %263 = vmatpush1.bf16.msra.mxu0 0
    %264 = vmatprep.subr.bf16.mxu0 0
    %265 = vmatpush1.bf16.msra.mxu0 0
    %266 = vmatprep.subr.bf16.mxu0 0
    %267 = vmatpush1.bf16.msra.mxu0 0
    %268 = vmatprep.mubr.bf16.mxu0 0
    %269 = vmatmul.mubr.bf16.gmra.mrb[0].mxu0 %v190
    %v270 = vpop.f32.mrb[0].mxu0
    %v271 = vadd.f32 %v231, %v270
    %v272 = vpop.f32.mrb[0].mxu0
    %v273 = vpop.f32.mrb[0].mxu0
    %v274 = vpop.f32.mrb[0].mxu0
    %275 = vdwg.mxu0
    %v276 = vmax.f32 %v271, 0.0
    %v277 = vpack.c.bf16 %v276, %v276
    %v278 = vld [vmem:[%s2] sm:$0xf]
    %v279 = vld [vmem:[%s2 + $0x4] sm:$0xf]
    %v280 = vld [vmem:[%s2 + $0x8] sm:$0xf]
    %v281 = vld [vmem:[%s2 + $0xc] sm:$0xf]
    %v282 = vld [vmem:[%s2 + $0x10] sm:$0xf]
    %v283 = vld [vmem:[%s2 + $0x14] sm:$0xf]
    %v284 = vld [vmem:[%s2 + $0x18] sm:$0x1]
    %v285 = vlaneseq
    %v286 = vshrl.u32 %v285, 7
    %v287 = vsub.s32 0, %v286
    %v288 = vrot.slane %v22, %v287
    %v296 = vunpack.c.l.b16 %v278
    %v297 = vunpack.c.l.b16 %v279
    %v298 = vunpack.c.l.b16 %v280
    %v299 = vunpack.c.l.b16 %v281
    %v300 = vunpack.c.l.b16 %v282
    %v301 = vunpack.c.l.b16 %v283
    %v302 = vunpack.c.l.b16 %v284
    %v303 = vpack.c.b16 %v297, %v296
    %v304 = vpack.c.b16 %v299, %v298
    %v305 = vpack.c.b16 %v301, %v300
    %v306 = vpack.c.b16 %v302, %v302
    %vm310 = vcmask 408576
    %v312 = vsel %vm310, %v277, 0
    %vm314 = vcmask 1040384
    %v316 = vsel %vm314, %v306, 0
    %318 = vmatprep.subr.bf16.mxu0 0
    %319 = vmatpush1.bf16.msra.mxu0 %v303
    %320 = vmatprep.subr.bf16.mxu0 0
    %321 = vmatpush1.bf16.msra.mxu0 %v304
    %322 = vmatprep.subr.bf16.mxu0 0
    %323 = vmatpush1.bf16.msra.mxu0 %v305
    %324 = vmatprep.subr.bf16.mxu0 0
    %325 = vmatpush1.bf16.msra.mxu0 %v316
    %326 = vmatprep.subr.bf16.mxu0 0
    %327 = vmatpush1.bf16.msra.mxu0 0
    %328 = vmatprep.subr.bf16.mxu0 0
    %329 = vmatpush1.bf16.msra.mxu0 0
    %330 = vmatprep.subr.bf16.mxu0 0
    %331 = vmatpush1.bf16.msra.mxu0 0
    %332 = vmatprep.subr.bf16.mxu0 0
    %333 = vmatpush1.bf16.msra.mxu0 0
    %334 = vmatprep.subr.bf16.mxu0 0
    %335 = vmatpush1.bf16.msra.mxu0 0
    %336 = vmatprep.subr.bf16.mxu0 0
    %337 = vmatpush1.bf16.msra.mxu0 0
    %338 = vmatprep.subr.bf16.mxu0 0
    %339 = vmatpush1.bf16.msra.mxu0 0
    %340 = vmatprep.subr.bf16.mxu0 0
    %341 = vmatpush1.bf16.msra.mxu0 0
    %342 = vmatprep.subr.bf16.mxu0 0
    %343 = vmatpush1.bf16.msra.mxu0 0
    %344 = vmatprep.subr.bf16.mxu0 0
    %345 = vmatpush1.bf16.msra.mxu0 0
    %346 = vmatprep.subr.bf16.mxu0 0
    %347 = vmatpush1.bf16.msra.mxu0 0
    %348 = vmatprep.subr.bf16.mxu0 0
    %349 = vmatpush1.bf16.msra.mxu0 0
    %350 = vmatprep.mubr.bf16.mxu0 0
    %351 = vmatmul.mubr.bf16.gmra.mrb[0].mxu0 %v312
    %v352 = vpop.f32.mrb[0].mxu0
    %v353 = vadd.f32 %v288, %v352
    %v354 = vpop.f32.mrb[0].mxu0
    %v355 = vpop.f32.mrb[0].mxu0
    %v356 = vpop.f32.mrb[0].mxu0
    %357 = vdwg.mxu0
    %v358 = vmul.f32 %v353, %v353
    %v359 = vsel %vm310, %v358, 0.0
    %360 = vadd.xlane.f32.xlu0 %v359
    %v361 = vpop.xlane.xlu0 %360
    %v362 = vadd.f32 %v361, %v353
    %v363 = vmax.f32 %v362, 0.0
    %v364 = vadd.f32 %v363, 1.0
    %v365 = vlog2.pop %v364
    %v366 = vmul.f32 %v365, 0.6931472
    %v367 = vadd.f32 %v363, 1e-05
    %v368 = vlog2.pop %v367
    %v369 = vmul.f32 %v368, 0.6931472
    %v370 = vsub.f32 %v366, %v369
    %v371 = vlaneseq
    %v372 = vshrl.u32 %v371, 7
    %v373 = vlaneseq
    %v374 = vand.u32 %v373, 127
    %v375 = vmul.u32 %v374, 2
    %vm376 = vcmp.eq.s32.totalorder %v372, %v375
    %v377 = vsel %vm376, 1.0, 0.0
    %v378 = vadd.s32 %v375, 1
    %vm379 = vcmp.eq.s32.totalorder %v372, %v378
    %v380 = vsel %vm379, 1.0, 0.0
    %v381 = vsub.f32 %v377, %v380
    %383 = vrot.lane.b32.xlu0 %v370, 78
    %v384 = vpop.permute.xlu0 %383
    %vm385 = vcmask 64512
    %v386 = vsel %vm385, %v384, 0
    %388 = vmatprep.subr.mxu0 0.0
    %389 = vmatpush1.msra.mxu0 %v381
    %390 = vmatprep.subr.mxu0 0.0
    %391 = vmatpush1.msra.mxu0 0.0
    %392 = vmatprep.subr.mxu0 0.0
    %393 = vmatpush1.msra.mxu0 0.0
    %394 = vmatprep.subr.mxu0 0.0
    %395 = vmatpush1.msra.mxu0 0.0
    %396 = vmatprep.subr.mxu0 0.0
    %397 = vmatpush1.msra.mxu0 0.0
    %398 = vmatprep.subr.mxu0 0.0
    %399 = vmatpush1.msra.mxu0 0.0
    %400 = vmatprep.subr.mxu0 0.0
    %401 = vmatpush1.msra.mxu0 0.0
    %402 = vmatprep.subr.mxu0 0.0
    %403 = vmatpush1.msra.mxu0 0.0
    %404 = vmatprep.subr.mxu0 0.0
    %405 = vmatpush1.msra.mxu0 0.0
    %406 = vmatprep.subr.mxu0 0.0
    %407 = vmatpush1.msra.mxu0 0.0
    %408 = vmatprep.subr.mxu0 0.0
    %409 = vmatpush1.msra.mxu0 0.0
    %410 = vmatprep.subr.mxu0 0.0
    %411 = vmatpush1.msra.mxu0 0.0
    %412 = vmatprep.subr.mxu0 0.0
    %413 = vmatpush1.msra.mxu0 0.0
    %414 = vmatprep.subr.mxu0 0.0
    %415 = vmatpush1.msra.mxu0 0.0
    %416 = vmatprep.subr.mxu0 0.0
    %417 = vmatpush1.msra.mxu0 0.0
    %418 = vmatprep.subr.mxu0 0.0
    %419 = vmatpush1.msra.mxu0 0.0
    %420 = vmatprep.subr.mxu0 0.0
    %421 = vmatpush1.msra.mxu0 0.0
    %422 = vmatprep.subr.mxu0 0.0
    %423 = vmatpush1.msra.mxu0 0.0
    %424 = vmatprep.subr.mxu0 0.0
    %425 = vmatpush1.msra.mxu0 0.0
    %426 = vmatprep.subr.mxu0 0.0
    %427 = vmatpush1.msra.mxu0 0.0
    %428 = vmatprep.subr.mxu0 0.0
    %429 = vmatpush1.msra.mxu0 0.0
    %430 = vmatprep.subr.mxu0 0.0
    %431 = vmatpush1.msra.mxu0 0.0
    %432 = vmatprep.subr.mxu0 0.0
    %433 = vmatpush1.msra.mxu0 0.0
    %434 = vmatprep.subr.mxu0 0.0
    %435 = vmatpush1.msra.mxu0 0.0
    %436 = vmatprep.subr.mxu0 0.0
    %437 = vmatpush1.msra.mxu0 0.0
    %438 = vmatprep.subr.mxu0 0.0
    %439 = vmatpush1.msra.mxu0 0.0
    %440 = vmatprep.subr.mxu0 0.0
    %441 = vmatpush1.msra.mxu0 0.0
    %442 = vmatprep.subr.mxu0 0.0
    %443 = vmatpush1.msra.mxu0 0.0
    %444 = vmatprep.subr.mxu0 0.0
    %445 = vmatpush1.msra.mxu0 0.0
    %446 = vmatprep.subr.mxu0 0.0
    %447 = vmatpush1.msra.mxu0 0.0
    %448 = vmatprep.subr.mxu0 0.0
    %449 = vmatpush1.msra.mxu0 0.0
    %450 = vmatprep.subr.mxu0 0.0
    %451 = vmatpush1.msra.mxu0 0.0
    %452 = vmatprep.mubr.f32.mxu0 0.0
    %453 = vmatmul.mubr.f32.gmra.mrb[0].mxu0 %v386
    %v454 = vpop.f32.mrb[0].mxu0
    %v455 = vadd.f32 0.0, %v454
    %v456 = vpop.f32.mrb[0].mxu0
    %457 = vdwg.mxu0
    %v458 = vtanh.pop %v455
    %460 = vrot.lane.b32.xlu0 %v458, 50
    %v461 = vpop.permute.xlu0 %460
    %v463 = vsel %vm310, %v353, %v461
    %vm464 = vcmask 441344
    %v465 = vsel %vm464, %v463, 0.0
    %vm466 = vcmask 523264
    %467 = vst.msk [vmem:[#allocation2] sm:$0xff] %vm466, %v465
    // Predicated region
    $region18: #{tpu_custom_call.1} parent=1 // pred_check
      _
    $region19: #{tpu_custom_call.1} parent=1 // pred_check_branch
      %469 = sbr.rel (0) target = $region21
    $region20: #{tpu_custom_call.1} parent=1 // pred_region
      %s471 = ssub.s32 128, 128
      %472 = vsyncadd [#allocation3], %s471
      %s474 = sshll.u32 [#allocation2], 4
      %s475 = int_to_ptr.vmem [resolvable:$true] %s474
      %477 = dma.vmem_to_hbm [thread:$0]  %s475, 128, %s4, [#allocation3]
    $region21: #{tpu_custom_call.1} parent=1 // pred_fallthru
      _
    // Predicated region
    $region22: #{tpu_custom_call.1} parent=1 // pred_check
      _
    $region23: #{tpu_custom_call.1} parent=1 // pred_check_branch
      %479 = sbr.rel (0) target = $region25
    $region24: #{tpu_custom_call.1} parent=1 // pred_region
      %480 = dma.done [#allocation3], 128
    $region25: #{tpu_custom_call.1} parent=1 // pred_fallthru
      _
    %481 = vsyncpa [#allocation3], 1

</llo_original>
